<compile_context>
chip_gen: v7x
topology: tpu7x:2x2x1
jax: 0.10.0
libtpu: 0.0.40
codegen_flags: <defaults>
</compile_context>

<pallas_src>
import functools

import jax
import jax.numpy as jnp
from jax.experimental import pallas as pl
from jax.experimental.pallas import tpu as pltpu

EPS = 1e-5   # nn.GroupNorm default eps
K = 3        # conv kernel size


def _shift_flat(a, off):
    """result[:, p] = a[:, p + off] (zero fill at the ends, no wrap). `off` static."""
    if off == 0:
        return a
    rows, hw = a.shape
    z = jnp.zeros((rows, abs(off)), a.dtype)
    if off > 0:
        return jnp.concatenate([a[:, off:], z], axis=1)
    return jnp.concatenate([z, a[:, :hw + off]], axis=1)


def _residual_block_kernel(x_ref, w1_ref, w2_ref, pc_ref, A_ref, mask_ref,
                           out_ref, *, H, W):
    HW = H * W
    A = A_ref[...]                  # (C, C) group-averaging matrix (has 1/(HW*Cg) baked in)
    pc = pc_ref[...]                # (C, 8) packed per-channel params, f32
    b1, g1, be1 = pc[:, 0:1], pc[:, 1:2], pc[:, 2:3]
    b2, g2, be2 = pc[:, 3:4], pc[:, 4:5], pc[:, 5:6]
    w1 = w1_ref[...]                # (Cout, 9*Cin)  bf16
    w2 = w2_ref[...]                # (Cout, 9*Cout) bf16

    # Precomputed, grid-invariant column-wrap masks (source coordinates).
    cm = mask_ref[...]                          # (2, HW) f32 of 0/1
    keep_m1 = cm[0:1, :] != 0.0                 # keep where col != W-1  (taps with dw = -1)
    keep_p1 = cm[1:2, :] != 0.0                 # keep where col != 0    (taps with dw = +1)

    def conv3x3(act_f32, w):
        """3x3 'same' conv as ONE im2col matmul (Cout, 9*Cin) x (9*Cin, HW), bf16 -> f32."""
        act = act_f32.astype(jnp.bfloat16)
        # Pre-mask the columns that would wrap across rows; the flat end-fill in
        # _shift_flat already zeroes the top/bottom halo -> only 2 selects per conv.
        act_dw = {-1: jnp.where(keep_m1, act, 0),
                  0: act,
                  1: jnp.where(keep_p1, act, 0)}
        cols = []
        for kh in range(K):
            for kw in range(K):
                dh, dw = kh - 1, kw - 1
                cols.append(_shift_flat(act_dw[dw], dh * W + dw))
        patches = jnp.concatenate(cols, axis=0)           # (9*Cin, HW) bf16
        return jnp.dot(w, patches, preferred_element_type=jnp.float32)

    def group_norm_relu(acc, b, g, be):
        # GroupNorm with the conv bias folded into a (C,1) mean shift:
        #   z = acc + b ; cent = z - mean_grp(z) = acc - (A @ (sum(acc) + HW*b) - b)
        ch_sum = jnp.sum(acc, axis=1, keepdims=True)                        # (C, 1)
        mean_shift = jnp.dot(A, ch_sum + float(HW) * b,
                             preferred_element_type=jnp.float32) - b
        cent = acc - mean_shift
        ch_sq = jnp.sum(cent * cent, axis=1, keepdims=True)                 # two-pass var
        var = jnp.dot(A, ch_sq, preferred_element_type=jnp.float32)
        scale = jax.lax.rsqrt(var + EPS) * g          # fold gamma before the (C,HW) mul
        return jnp.maximum(cent * scale + be, 0.0)

    nb = x_ref.shape[0]
    for i in range(nb):                                   # static, small unroll
        x = x_ref[i]                                      # (C, HW) f32 (residual + conv1 input)
        y = group_norm_relu(conv3x3(x, w1), b1, g1, be1)
        y = group_norm_relu(conv3x3(y, w2), b2, g2, be2)
        out_ref[i] = jnp.maximum(x + y, 0.0).astype(out_ref.dtype)


def _pick_batch_block(N, C, HW):
    """Images per grid step: keep the grid >= 2 steps when N >= 2 (one per v7x
    TensorCore), capped so the double-buffered f32 in/out blocks stay small,
    and nb must divide N."""
    per_img_io = 4 * C * HW * 4            # in + out, double-buffered, f32
    cap = max(1, (4 * 1024 * 1024) // per_img_io)
    nb = max(1, min(N // 2 if N >= 2 else 1, cap))
    while N % nb:
        nb -= 1
    return nb


def _vmem_limit_bytes(nb, C, HW):
    f32, bf16 = 4, 2
    est = (4 * nb * C * HW * f32                    # double-buffered in/out blocks
           + 9 * C * HW * bf16                      # im2col patch matrix
           + 4 * C * HW * f32 + 3 * C * HW * bf16   # acc/cent/y f32 + bf16 act copies
           + 2 * 9 * C * C * bf16                   # both weight matrices
           + C * C * f32 + 8 * C * f32 + 2 * HW * f32)
    return int(min(64 * 1024 * 1024, max(8 * 1024 * 1024, 2 * est)))


def residual_block_forward(params, x_nchw, num_groups):
    N, Cin, H, W = x_nchw.shape
    planes = params["w1"].shape[-1]
    assert Cin == planes, "stride=1 residual add requires in_planes == planes"
    HW = H * W
    cg = planes // num_groups

    # Free reshape: stay in NCHW, flatten spatial onto the lane axis.
    x2 = x_nchw.astype(jnp.float32).reshape(N, Cin, HW)

    # Group-averaging matrix: A[i, j] = 1/(H*W*Cg) if channels i, j share a group.
    grp = jnp.arange(planes) // cg
    A = (grp[:, None] == grp[None, :]).astype(jnp.float32) / float(HW * cg)

    def wmat(w_hwio):   # (K, K, Cin, Cout) -> (Cout, K*K*Cin), (kh, kw, cin) minor order
        cout = w_hwio.shape[-1]
        return jnp.transpose(w_hwio, (3, 0, 1, 2)).reshape(cout, -1).astype(jnp.bfloat16)

    # Pack the six per-channel vectors into ONE (C, 8) operand (single small DMA).
    def col(v):
        return v.astype(jnp.float32).reshape(-1, 1)
    zeros = jnp.zeros((planes, 1), jnp.float32)
    pc = jnp.concatenate([col(params["b1"]), col(params["g1"]), col(params["beta1"]),
                          col(params["b2"]), col(params["g2"]), col(params["beta2"]),
                          zeros, zeros], axis=1)                          # (C, 8)

    # Precomputed column-wrap keep-masks (hoisted out of the kernel body).
    colv = jnp.arange(HW, dtype=jnp.int32) % W
    colmask = jnp.stack([(colv != W - 1), (colv != 0)]).astype(jnp.float32)   # (2, HW)

    nb = _pick_batch_block(N, Cin, HW)
    grid = (N // nb,)

    args = (x2, wmat(params["w1"]), wmat(params["w2"]), pc, A, colmask)

    def full_spec(a):
        return pl.BlockSpec(a.shape, lambda n: (0,) * a.ndim)

    in_specs = [pl.BlockSpec((nb, Cin, HW), lambda n: (n, 0, 0))]
    in_specs += [full_spec(a) for a in args[1:]]

    out = pl.pallas_call(
        functools.partial(_residual_block_kernel, H=H, W=W),
        out_shape=jax.ShapeDtypeStruct((N, planes, HW), jnp.float32),
        grid=grid,
        in_specs=in_specs,
        out_specs=pl.BlockSpec((nb, planes, HW), lambda n: (n, 0, 0)),
        compiler_params=pltpu.CompilerParams(
            dimension_semantics=("parallel",),     # batch blocks are independent
            vmem_limit_bytes=_vmem_limit_bytes(nb, planes, HW)),
    )(*args)
    return out.reshape(N, planes, H, W)


def init_params(key, in_planes, planes):
    """Deterministic synthetic parameters (shapes from ResidualBlock.__init__)."""
    ks = jax.random.split(key, 8)
    return dict(
        w1=0.1 * jax.random.normal(ks[0], (K, K, in_planes, planes), jnp.float32),
        b1=0.05 * jax.random.normal(ks[1], (planes,), jnp.float32),
        g1=1.0 + 0.1 * jax.random.normal(ks[2], (planes,), jnp.float32),
        beta1=0.1 * jax.random.normal(ks[3], (planes,), jnp.float32),
        w2=0.1 * jax.random.normal(ks[4], (K, K, planes, planes), jnp.float32),
        b2=0.05 * jax.random.normal(ks[5], (planes,), jnp.float32),
        g2=1.0 + 0.1 * jax.random.normal(ks[6], (planes,), jnp.float32),
        beta2=0.1 * jax.random.normal(ks[7], (planes,), jnp.float32),
    )


def _reference_forward(params, x_nchw, num_groups):
    """Pure-JAX reference mirroring the PyTorch forward (bf16 MXU inputs, f32 accumulate/GN)."""
    def conv(x, w_hwio, b):
        w = jnp.transpose(w_hwio, (3, 2, 0, 1))                    # OIHW
        y = jax.lax.conv_general_dilated(
            x.astype(jnp.bfloat16), w.astype(jnp.bfloat16),
            window_strides=(1, 1), padding="SAME",
            dimension_numbers=("NCHW", "OIHW", "NCHW"),
            preferred_element_type=jnp.float32)
        return y + b[None, :, None, None]

    def gn(x, gamma, beta):
        N, C, H, W = x.shape
        xr = x.reshape(N, num_groups, C // num_groups, H, W)
        mean = xr.mean(axis=(2, 3, 4), keepdims=True)
        var = ((xr - mean) ** 2).mean(axis=(2, 3, 4), keepdims=True)
        xn = ((xr - mean) * jax.lax.rsqrt(var + EPS)).reshape(N, C, H, W)
        return xn * gamma[None, :, None, None] + beta[None, :, None, None]

    x = x_nchw.astype(jnp.float32)
    y = jax.nn.relu(gn(conv(x, params["w1"], params["b1"]), params["g1"], params["beta1"]))
    y = jax.nn.relu(gn(conv(y, params["w2"], params["b2"]), params["g2"], params["beta2"]))
    return jax.nn.relu(x + y)


if __name__ == "__main__":
    # Small shapes consistent with the module: stride=1 requires in_planes == planes
    # for the residual add; GroupNorm needs planes % 8 == 0 (num_groups = planes // 8).
    N, in_planes, planes, Hsp, Wsp = 2, 16, 16, 16, 16
    num_groups = planes // 8

    key = jax.random.PRNGKey(0)
    kx, kp = jax.random.split(key)
    x = jax.random.normal(kx, (N, in_planes, Hsp, Wsp), jnp.float32)   # NCHW like PyTorch
    params = init_params(kp, in_planes, planes)

    fwd = jax.jit(residual_block_forward, static_argnums=(2,))
    out = jax.block_until_ready(fwd(params, x, num_groups))
    assert out.shape == (N, planes, Hsp, Wsp)

    ref = jax.block_until_ready(_reference_forward(params, x, num_groups))
    max_err = float(jnp.max(jnp.abs(out - ref)))
    assert jnp.allclose(out, ref, atol=1e-2, rtol=1e-2), f"max_err={max_err}"

    print("KERNEL_OK")
</pallas_src>

<mosaic_0001>
module attributes {stable_mosaic.version = 11 : i64} {
  func.func @_residual_block_kernel(%arg0: i32, %arg1: memref<1x16x256xf32, #tpu.memory_space<vmem>>, %arg2: memref<16x144xbf16, #tpu.memory_space<vmem>>, %arg3: memref<16x144xbf16, #tpu.memory_space<vmem>>, %arg4: memref<16x8xf32, #tpu.memory_space<vmem>>, %arg5: memref<16x16xf32, #tpu.memory_space<vmem>>, %arg6: memref<2x256xf32, #tpu.memory_space<vmem>>, %arg7: memref<1x16x256xf32, #tpu.memory_space<vmem>>) attributes {dimension_semantics = [#tpu.dimension_semantics<parallel>], iteration_bounds = array<i64: 2>, scalar_prefetch = 0 : i64, scratch_operands = 0 : i64, tpu.core_type = #tpu.core_type<tc>, window_params = [{transform_indices = @transform_0, window_bounds = array<i64: 1, 16, 256>}, {pipeline_mode = #tpu.pipeline_mode<synchronous>, transform_indices = @transform_1, window_bounds = array<i64: 16, 144>}, {pipeline_mode = #tpu.pipeline_mode<synchronous>, transform_indices = @transform_2, window_bounds = array<i64: 16, 144>}, {pipeline_mode = #tpu.pipeline_mode<synchronous>, transform_indices = @transform_3, window_bounds = array<i64: 16, 8>}, {pipeline_mode = #tpu.pipeline_mode<synchronous>, transform_indices = @transform_4, window_bounds = array<i64: 16, 16>}, {pipeline_mode = #tpu.pipeline_mode<synchronous>, transform_indices = @transform_5, window_bounds = array<i64: 2, 256>}, {transform_indices = @transform_6, window_bounds = array<i64: 1, 16, 256>}]} {
    %c0 = arith.constant 0 : index
    %c0_0 = arith.constant 0 : index
    %0 = vector.load %arg5[%c0, %c0_0] : memref<16x16xf32, #tpu.memory_space<vmem>>, vector<16x16xf32>
    %c0_1 = arith.constant 0 : index
    %c0_2 = arith.constant 0 : index
    %1 = vector.load %arg4[%c0_1, %c0_2] : memref<16x8xf32, #tpu.memory_space<vmem>>, vector<16x8xf32>
    %2 = vector.extract_strided_slice %1 {offsets = [0, 0], sizes = [16, 1], strides = [1, 1]} : vector<16x8xf32> to vector<16x1xf32>
    %3 = vector.extract_strided_slice %1 {offsets = [0, 1], sizes = [16, 1], strides = [1, 1]} : vector<16x8xf32> to vector<16x1xf32>
    %4 = vector.extract_strided_slice %1 {offsets = [0, 2], sizes = [16, 1], strides = [1, 1]} : vector<16x8xf32> to vector<16x1xf32>
    %5 = vector.extract_strided_slice %1 {offsets = [0, 3], sizes = [16, 1], strides = [1, 1]} : vector<16x8xf32> to vector<16x1xf32>
    %6 = vector.extract_strided_slice %1 {offsets = [0, 4], sizes = [16, 1], strides = [1, 1]} : vector<16x8xf32> to vector<16x1xf32>
    %7 = vector.extract_strided_slice %1 {offsets = [0, 5], sizes = [16, 1], strides = [1, 1]} : vector<16x8xf32> to vector<16x1xf32>
    %c0_3 = arith.constant 0 : index
    %c0_4 = arith.constant 0 : index
    %8 = vector.load %arg2[%c0_3, %c0_4] : memref<16x144xbf16, #tpu.memory_space<vmem>>, vector<16x144xbf16>
    %c0_5 = arith.constant 0 : index
    %c0_6 = arith.constant 0 : index
    %9 = vector.load %arg3[%c0_5, %c0_6] : memref<16x144xbf16, #tpu.memory_space<vmem>>, vector<16x144xbf16>
    %c0_7 = arith.constant 0 : index
    %c0_8 = arith.constant 0 : index
    %10 = vector.load %arg6[%c0_7, %c0_8] : memref<2x256xf32, #tpu.memory_space<vmem>>, vector<2x256xf32>
    %11 = vector.extract_strided_slice %10 {offsets = [0, 0], sizes = [1, 256], strides = [1, 1]} : vector<2x256xf32> to vector<1x256xf32>
    %cst = arith.constant 0.000000e+00 : f32
    %12 = vector.broadcast %cst : f32 to vector<1x256xf32>
    %13 = arith.cmpf one, %11, %12 : vector<1x256xf32>
    %14 = vector.extract_strided_slice %10 {offsets = [1, 0], sizes = [1, 256], strides = [1, 1]} : vector<2x256xf32> to vector<1x256xf32>
    %cst_9 = arith.constant 0.000000e+00 : f32
    %15 = vector.broadcast %cst_9 : f32 to vector<1x256xf32>
    %16 = arith.cmpf one, %14, %15 : vector<1x256xf32>
    %c0_10 = arith.constant 0 : index
    %c0_11 = arith.constant 0 : index
    %c0_12 = arith.constant 0 : index
    %17 = vector.load %arg1[%c0_10, %c0_11, %c0_12] : memref<1x16x256xf32, #tpu.memory_space<vmem>>, vector<1x16x256xf32>
    %18 = vector.shape_cast %17 : vector<1x16x256xf32> to vector<16x256xf32>
    %19 = arith.truncf %18 : vector<16x256xf32> to vector<16x256xbf16>
    %c0_i32 = arith.constant 0 : i32
    %20 = arith.sitofp %c0_i32 : i32 to bf16
    %21 = vector.shape_cast %13 : vector<1x256xi1> to vector<1x256xi1>
    %22 = vector.broadcast %21 : vector<1x256xi1> to vector<16x256xi1>
    %23 = vector.broadcast %20 : bf16 to vector<16x256xbf16>
    %24 = arith.select %22, %19, %23 : vector<16x256xi1>, vector<16x256xbf16>
    %c0_i32_13 = arith.constant 0 : i32
    %25 = arith.sitofp %c0_i32_13 : i32 to bf16
    %26 = vector.shape_cast %16 : vector<1x256xi1> to vector<1x256xi1>
    %27 = vector.broadcast %26 : vector<1x256xi1> to vector<16x256xi1>
    %28 = vector.broadcast %25 : bf16 to vector<16x256xbf16>
    %29 = arith.select %27, %19, %28 : vector<16x256xi1>, vector<16x256xbf16>
    %cst_14 = arith.constant 0.000000e+00 : bf16
    %30 = vector.broadcast %cst_14 : bf16 to vector<16x17xbf16>
    %31 = vector.extract_strided_slice %24 {offsets = [0, 0], sizes = [16, 239], strides = [1, 1]} : vector<16x256xbf16> to vector<16x239xbf16>
    %32 = tpu.concatenate %30, %31 in 1 : vector<16x17xbf16>, vector<16x239xbf16> -> vector<16x256xbf16>
    %cst_15 = arith.constant 0.000000e+00 : bf16
    %33 = vector.broadcast %cst_15 : bf16 to vector<16x16xbf16>
    %34 = vector.extract_strided_slice %19 {offsets = [0, 0], sizes = [16, 240], strides = [1, 1]} : vector<16x256xbf16> to vector<16x240xbf16>
    %35 = tpu.concatenate %33, %34 in 1 : vector<16x16xbf16>, vector<16x240xbf16> -> vector<16x256xbf16>
    %cst_16 = arith.constant 0.000000e+00 : bf16
    %36 = vector.broadcast %cst_16 : bf16 to vector<16x15xbf16>
    %37 = vector.extract_strided_slice %29 {offsets = [0, 0], sizes = [16, 241], strides = [1, 1]} : vector<16x256xbf16> to vector<16x241xbf16>
    %38 = tpu.concatenate %36, %37 in 1 : vector<16x15xbf16>, vector<16x241xbf16> -> vector<16x256xbf16>
    %cst_17 = arith.constant 0.000000e+00 : bf16
    %39 = vector.broadcast %cst_17 : bf16 to vector<16x1xbf16>
    %40 = vector.extract_strided_slice %24 {offsets = [0, 0], sizes = [16, 255], strides = [1, 1]} : vector<16x256xbf16> to vector<16x255xbf16>
    %41 = tpu.concatenate %39, %40 in 1 : vector<16x1xbf16>, vector<16x255xbf16> -> vector<16x256xbf16>
    %cst_18 = arith.constant 0.000000e+00 : bf16
    %42 = vector.broadcast %cst_18 : bf16 to vector<16x1xbf16>
    %43 = vector.extract_strided_slice %29 {offsets = [0, 1], sizes = [16, 255], strides = [1, 1]} : vector<16x256xbf16> to vector<16x255xbf16>
    %44 = tpu.concatenate %43, %42 in 1 : vector<16x255xbf16>, vector<16x1xbf16> -> vector<16x256xbf16>
    %cst_19 = arith.constant 0.000000e+00 : bf16
    %45 = vector.broadcast %cst_19 : bf16 to vector<16x15xbf16>
    %46 = vector.extract_strided_slice %24 {offsets = [0, 15], sizes = [16, 241], strides = [1, 1]} : vector<16x256xbf16> to vector<16x241xbf16>
    %47 = tpu.concatenate %46, %45 in 1 : vector<16x241xbf16>, vector<16x15xbf16> -> vector<16x256xbf16>
    %cst_20 = arith.constant 0.000000e+00 : bf16
    %48 = vector.broadcast %cst_20 : bf16 to vector<16x16xbf16>
    %49 = vector.extract_strided_slice %19 {offsets = [0, 16], sizes = [16, 240], strides = [1, 1]} : vector<16x256xbf16> to vector<16x240xbf16>
    %50 = tpu.concatenate %49, %48 in 1 : vector<16x240xbf16>, vector<16x16xbf16> -> vector<16x256xbf16>
    %cst_21 = arith.constant 0.000000e+00 : bf16
    %51 = vector.broadcast %cst_21 : bf16 to vector<16x17xbf16>
    %52 = vector.extract_strided_slice %29 {offsets = [0, 17], sizes = [16, 239], strides = [1, 1]} : vector<16x256xbf16> to vector<16x239xbf16>
    %53 = tpu.concatenate %52, %51 in 1 : vector<16x239xbf16>, vector<16x17xbf16> -> vector<16x256xbf16>
    %54 = tpu.concatenate %32, %35, %38, %41, %19, %44, %47, %50, %53 in 0 : vector<16x256xbf16>, vector<16x256xbf16>, vector<16x256xbf16>, vector<16x256xbf16>, vector<16x256xbf16>, vector<16x256xbf16>, vector<16x256xbf16>, vector<16x256xbf16>, vector<16x256xbf16> -> vector<144x256xbf16>
    %cst_22 = arith.constant dense<0.000000e+00> : vector<16x256xf32>
    %55 = tpu.matmul %8, %54, %cst_22 {dimension_numbers = #tpu.dot_dimension_numbers<[1], [0], [0], [1], [0, 0, 1, 1], [], []>} : vector<16x144xbf16>, vector<144x256xbf16>, vector<16x256xf32> -> vector<16x256xf32>
    %cst_23 = arith.constant dense<0.000000e+00> : vector<16xf32>
    %56 = vector.multi_reduction <add>, %55, %cst_23 [1] : vector<16x256xf32> to vector<16xf32>
    %57 = vector.shape_cast %56 : vector<16xf32> to vector<16x1xf32>
    %cst_24 = arith.constant 2.560000e+02 : f32
    %58 = vector.broadcast %cst_24 : f32 to vector<16x1xf32>
    %59 = arith.mulf %58, %2 : vector<16x1xf32>
    %60 = arith.addf %57, %59 : vector<16x1xf32>
    %cst_25 = arith.constant dense<0.000000e+00> : vector<16x1xf32>
    %61 = tpu.matmul %0, %60, %cst_25 {dimension_numbers = #tpu.dot_dimension_numbers<[1], [0], [0], [1], [0, 0, 1, 1], [], []>} : vector<16x16xf32>, vector<16x1xf32>, vector<16x1xf32> -> vector<16x1xf32>
    %62 = arith.subf %61, %2 : vector<16x1xf32>
    %63 = vector.broadcast %62 : vector<16x1xf32> to vector<16x256xf32>
    %64 = arith.subf %55, %63 : vector<16x256xf32>
    %65 = arith.mulf %64, %64 : vector<16x256xf32>
    %cst_26 = arith.constant dense<0.000000e+00> : vector<16xf32>
    %66 = vector.multi_reduction <add>, %65, %cst_26 [1] : vector<16x256xf32> to vector<16xf32>
    %67 = vector.shape_cast %66 : vector<16xf32> to vector<16x1xf32>
    %cst_27 = arith.constant dense<0.000000e+00> : vector<16x1xf32>
    %68 = tpu.matmul %0, %67, %cst_27 {dimension_numbers = #tpu.dot_dimension_numbers<[1], [0], [0], [1], [0, 0, 1, 1], [], []>} : vector<16x16xf32>, vector<16x1xf32>, vector<16x1xf32> -> vector<16x1xf32>
    %cst_28 = arith.constant 9.99999974E-6 : f32
    %69 = vector.broadcast %cst_28 : f32 to vector<16x1xf32>
    %70 = arith.addf %68, %69 : vector<16x1xf32>
    %71 = math.rsqrt %70 : vector<16x1xf32>
    %72 = arith.mulf %71, %3 : vector<16x1xf32>
    %73 = vector.broadcast %72 : vector<16x1xf32> to vector<16x256xf32>
    %74 = arith.mulf %64, %73 : vector<16x256xf32>
    %75 = vector.broadcast %4 : vector<16x1xf32> to vector<16x256xf32>
    %76 = arith.addf %74, %75 : vector<16x256xf32>
    %cst_29 = arith.constant 0.000000e+00 : f32
    %77 = vector.broadcast %cst_29 : f32 to vector<16x256xf32>
    %78 = arith.maximumf %76, %77 : vector<16x256xf32>
    %79 = arith.truncf %78 : vector<16x256xf32> to vector<16x256xbf16>
    %c0_i32_30 = arith.constant 0 : i32
    %80 = arith.sitofp %c0_i32_30 : i32 to bf16
    %81 = vector.shape_cast %13 : vector<1x256xi1> to vector<1x256xi1>
    %82 = vector.broadcast %81 : vector<1x256xi1> to vector<16x256xi1>
    %83 = vector.broadcast %80 : bf16 to vector<16x256xbf16>
    %84 = arith.select %82, %79, %83 : vector<16x256xi1>, vector<16x256xbf16>
    %c0_i32_31 = arith.constant 0 : i32
    %85 = arith.sitofp %c0_i32_31 : i32 to bf16
    %86 = vector.shape_cast %16 : vector<1x256xi1> to vector<1x256xi1>
    %87 = vector.broadcast %86 : vector<1x256xi1> to vector<16x256xi1>
    %88 = vector.broadcast %85 : bf16 to vector<16x256xbf16>
    %89 = arith.select %87, %79, %88 : vector<16x256xi1>, vector<16x256xbf16>
    %cst_32 = arith.constant 0.000000e+00 : bf16
    %90 = vector.broadcast %cst_32 : bf16 to vector<16x17xbf16>
    %91 = vector.extract_strided_slice %84 {offsets = [0, 0], sizes = [16, 239], strides = [1, 1]} : vector<16x256xbf16> to vector<16x239xbf16>
    %92 = tpu.concatenate %90, %91 in 1 : vector<16x17xbf16>, vector<16x239xbf16> -> vector<16x256xbf16>
    %cst_33 = arith.constant 0.000000e+00 : bf16
    %93 = vector.broadcast %cst_33 : bf16 to vector<16x16xbf16>
    %94 = vector.extract_strided_slice %79 {offsets = [0, 0], sizes = [16, 240], strides = [1, 1]} : vector<16x256xbf16> to vector<16x240xbf16>
    %95 = tpu.concatenate %93, %94 in 1 : vector<16x16xbf16>, vector<16x240xbf16> -> vector<16x256xbf16>
    %cst_34 = arith.constant 0.000000e+00 : bf16
    %96 = vector.broadcast %cst_34 : bf16 to vector<16x15xbf16>
    %97 = vector.extract_strided_slice %89 {offsets = [0, 0], sizes = [16, 241], strides = [1, 1]} : vector<16x256xbf16> to vector<16x241xbf16>
    %98 = tpu.concatenate %96, %97 in 1 : vector<16x15xbf16>, vector<16x241xbf16> -> vector<16x256xbf16>
    %cst_35 = arith.constant 0.000000e+00 : bf16
    %99 = vector.broadcast %cst_35 : bf16 to vector<16x1xbf16>
    %100 = vector.extract_strided_slice %84 {offsets = [0, 0], sizes = [16, 255], strides = [1, 1]} : vector<16x256xbf16> to vector<16x255xbf16>
    %101 = tpu.concatenate %99, %100 in 1 : vector<16x1xbf16>, vector<16x255xbf16> -> vector<16x256xbf16>
    %cst_36 = arith.constant 0.000000e+00 : bf16
    %102 = vector.broadcast %cst_36 : bf16 to vector<16x1xbf16>
    %103 = vector.extract_strided_slice %89 {offsets = [0, 1], sizes = [16, 255], strides = [1, 1]} : vector<16x256xbf16> to vector<16x255xbf16>
    %104 = tpu.concatenate %103, %102 in 1 : vector<16x255xbf16>, vector<16x1xbf16> -> vector<16x256xbf16>
    %cst_37 = arith.constant 0.000000e+00 : bf16
    %105 = vector.broadcast %cst_37 : bf16 to vector<16x15xbf16>
    %106 = vector.extract_strided_slice %84 {offsets = [0, 15], sizes = [16, 241], strides = [1, 1]} : vector<16x256xbf16> to vector<16x241xbf16>
    %107 = tpu.concatenate %106, %105 in 1 : vector<16x241xbf16>, vector<16x15xbf16> -> vector<16x256xbf16>
    %cst_38 = arith.constant 0.000000e+00 : bf16
    %108 = vector.broadcast %cst_38 : bf16 to vector<16x16xbf16>
    %109 = vector.extract_strided_slice %79 {offsets = [0, 16], sizes = [16, 240], strides = [1, 1]} : vector<16x256xbf16> to vector<16x240xbf16>
    %110 = tpu.concatenate %109, %108 in 1 : vector<16x240xbf16>, vector<16x16xbf16> -> vector<16x256xbf16>
    %cst_39 = arith.constant 0.000000e+00 : bf16
    %111 = vector.broadcast %cst_39 : bf16 to vector<16x17xbf16>
    %112 = vector.extract_strided_slice %89 {offsets = [0, 17], sizes = [16, 239], strides = [1, 1]} : vector<16x256xbf16> to vector<16x239xbf16>
    %113 = tpu.concatenate %112, %111 in 1 : vector<16x239xbf16>, vector<16x17xbf16> -> vector<16x256xbf16>
    %114 = tpu.concatenate %92, %95, %98, %101, %79, %104, %107, %110, %113 in 0 : vector<16x256xbf16>, vector<16x256xbf16>, vector<16x256xbf16>, vector<16x256xbf16>, vector<16x256xbf16>, vector<16x256xbf16>, vector<16x256xbf16>, vector<16x256xbf16>, vector<16x256xbf16> -> vector<144x256xbf16>
    %cst_40 = arith.constant dense<0.000000e+00> : vector<16x256xf32>
    %115 = tpu.matmul %9, %114, %cst_40 {dimension_numbers = #tpu.dot_dimension_numbers<[1], [0], [0], [1], [0, 0, 1, 1], [], []>} : vector<16x144xbf16>, vector<144x256xbf16>, vector<16x256xf32> -> vector<16x256xf32>
    %cst_41 = arith.constant dense<0.000000e+00> : vector<16xf32>
    %116 = vector.multi_reduction <add>, %115, %cst_41 [1] : vector<16x256xf32> to vector<16xf32>
    %117 = vector.shape_cast %116 : vector<16xf32> to vector<16x1xf32>
    %cst_42 = arith.constant 2.560000e+02 : f32
    %118 = vector.broadcast %cst_42 : f32 to vector<16x1xf32>
    %119 = arith.mulf %118, %5 : vector<16x1xf32>
    %120 = arith.addf %117, %119 : vector<16x1xf32>
    %cst_43 = arith.constant dense<0.000000e+00> : vector<16x1xf32>
    %121 = tpu.matmul %0, %120, %cst_43 {dimension_numbers = #tpu.dot_dimension_numbers<[1], [0], [0], [1], [0, 0, 1, 1], [], []>} : vector<16x16xf32>, vector<16x1xf32>, vector<16x1xf32> -> vector<16x1xf32>
    %122 = arith.subf %121, %5 : vector<16x1xf32>
    %123 = vector.broadcast %122 : vector<16x1xf32> to vector<16x256xf32>
    %124 = arith.subf %115, %123 : vector<16x256xf32>
    %125 = arith.mulf %124, %124 : vector<16x256xf32>
    %cst_44 = arith.constant dense<0.000000e+00> : vector<16xf32>
    %126 = vector.multi_reduction <add>, %125, %cst_44 [1] : vector<16x256xf32> to vector<16xf32>
    %127 = vector.shape_cast %126 : vector<16xf32> to vector<16x1xf32>
    %cst_45 = arith.constant dense<0.000000e+00> : vector<16x1xf32>
    %128 = tpu.matmul %0, %127, %cst_45 {dimension_numbers = #tpu.dot_dimension_numbers<[1], [0], [0], [1], [0, 0, 1, 1], [], []>} : vector<16x16xf32>, vector<16x1xf32>, vector<16x1xf32> -> vector<16x1xf32>
    %cst_46 = arith.constant 9.99999974E-6 : f32
    %129 = vector.broadcast %cst_46 : f32 to vector<16x1xf32>
    %130 = arith.addf %128, %129 : vector<16x1xf32>
    %131 = math.rsqrt %130 : vector<16x1xf32>
    %132 = arith.mulf %131, %6 : vector<16x1xf32>
    %133 = vector.broadcast %132 : vector<16x1xf32> to vector<16x256xf32>
    %134 = arith.mulf %124, %133 : vector<16x256xf32>
    %135 = vector.broadcast %7 : vector<16x1xf32> to vector<16x256xf32>
    %136 = arith.addf %134, %135 : vector<16x256xf32>
    %cst_47 = arith.constant 0.000000e+00 : f32
    %137 = vector.broadcast %cst_47 : f32 to vector<16x256xf32>
    %138 = arith.maximumf %136, %137 : vector<16x256xf32>
    %139 = arith.addf %18, %138 : vector<16x256xf32>
    %cst_48 = arith.constant 0.000000e+00 : f32
    %140 = vector.broadcast %cst_48 : f32 to vector<16x256xf32>
    %141 = arith.maximumf %139, %140 : vector<16x256xf32>
    %c0_49 = arith.constant 0 : index
    %c0_50 = arith.constant 0 : index
    %c0_51 = arith.constant 0 : index
    %142 = vector.load %arg7[%c0_49, %c0_50, %c0_51] : memref<1x16x256xf32, #tpu.memory_space<vmem>>, vector<1x16x256xf32>
    %143 = vector.shape_cast %142 : vector<1x16x256xf32> to vector<16x256xf32>
    %144 = vector.shape_cast %141 : vector<16x256xf32> to vector<1x16x256xf32>
    tpu.vector_store %arg7[%c0_49, %c0_50, %c0_51], %144 {strides = array<i32>} : memref<1x16x256xf32, #tpu.memory_space<vmem>>, vector<1x16x256xf32>,
    return
  }
  func.func @transform_0(%arg0: i32) -> (i32, i32, i32) {
    %c0_i32 = arith.constant 0 : i32
    %c0_i32_0 = arith.constant 0 : i32
    %c0_i32_1 = arith.constant 0 : i32
    return %arg0, %c0_i32, %c0_i32_0 : i32, i32, i32
  }
  func.func @transform_1(%arg0: i32) -> (i32, i32) {
    %c0_i32 = arith.constant 0 : i32
    %c0_i32_0 = arith.constant 0 : i32
    %c0_i32_1 = arith.constant 0 : i32
    return %c0_i32, %c0_i32_0 : i32, i32
  }
  func.func @transform_2(%arg0: i32) -> (i32, i32) {
    %c0_i32 = arith.constant 0 : i32
    %c0_i32_0 = arith.constant 0 : i32
    %c0_i32_1 = arith.constant 0 : i32
    return %c0_i32, %c0_i32_0 : i32, i32
  }
  func.func @transform_3(%arg0: i32) -> (i32, i32) {
    %c0_i32 = arith.constant 0 : i32
    %c0_i32_0 = arith.constant 0 : i32
    %c0_i32_1 = arith.constant 0 : i32
    return %c0_i32, %c0_i32_0 : i32, i32
  }
  func.func @transform_4(%arg0: i32) -> (i32, i32) {
    %c0_i32 = arith.constant 0 : i32
    %c0_i32_0 = arith.constant 0 : i32
    %c0_i32_1 = arith.constant 0 : i32
    return %c0_i32, %c0_i32_0 : i32, i32
  }
  func.func @transform_5(%arg0: i32) -> (i32, i32) {
    %c0_i32 = arith.constant 0 : i32
    %c0_i32_0 = arith.constant 0 : i32
    %c0_i32_1 = arith.constant 0 : i32
    return %c0_i32, %c0_i32_0 : i32, i32
  }
  func.func @transform_6(%arg0: i32) -> (i32, i32, i32) {
    %c0_i32 = arith.constant 0 : i32
    %c0_i32_0 = arith.constant 0 : i32
    %c0_i32_1 = arith.constant 0 : i32
    return %arg0, %c0_i32, %c0_i32_0 : i32, i32, i32
  }
}

</mosaic_0001>

<llo_original>
// kernel: residual_block_forward.1
$region0: #{residual_block_forward.1}
  #allocation0 [shape = 'u32[]', space=smem, size = 0x4, offset = 0x4, fixed_abs, tag = 'smem constant byte address 0x4 - core index']
  #allocation1 [shape = 'u32[144,128]{1,0:T(1,128)}', space=vmem, size = 0x12000, scoped, tag = 'internal scratch']
  %s0 = inlined_call_operand.vmem [shape: f32[2,16,256], index: 0, kind: input, shape index: {}]
  %s1 = inlined_call_operand.vmem [shape: bf16[16,144], index: 1, kind: input, shape index: {}]
  %s2 = inlined_call_operand.vmem [shape: bf16[16,144], index: 2, kind: input, shape index: {}]
  %s3 = inlined_call_operand.vmem [shape: f32[16,8], index: 3, kind: input, shape index: {}]
  %s4 = inlined_call_operand.vmem [shape: f32[16,16], index: 4, kind: input, shape index: {}]
  %s5 = inlined_call_operand.vmem [shape: f32[2,256], index: 5, kind: input, shape index: {}]
  %s6 = inlined_call_operand.vmem [shape: f32[2,16,256], index: 6, kind: output, shape index: {}]
  %s7 = sld [smem:[#allocation0]]
  $region57: #{residual_block_forward.1} parent=0
    _
  %s9 = ssub.s32 1, %s7
  %s10 = scalar_select 0, %s9, %s7
  loop: start=0, step=1, limit=4
  $region2: #{residual_block_forward.1} parent=0 // loop_pre_header
    _
  $region3: #{residual_block_forward.1} parent=0 // loop_header
    %s12 = sphi 0, %s16
    %p13 = scmp.ge.s32.totalorder %s12, 4
    %s22 = sphi 0, %s24
    %s25 = sphi 0, %s22
    %s26 = sphi 0, %s25
    %s42 = sphi 0, %s26
    %s46 = sphi 0, %s46
    %s48 = sphi 0, %s46
    %s49 = sphi 0, %s48
    %s63 = sphi 0, %s49
    %s67 = sphi 0, %s67
    %s69 = sphi 0, %s67
    %s70 = sphi 0, %s69
    %s84 = sphi 0, %s70
    %s88 = sphi 0, %s88
    %s90 = sphi 0, %s88
    %s91 = sphi 0, %s90
    %s105 = sphi 0, %s91
    %s109 = sphi 0, %s109
    %s111 = sphi 0, %s109
    %s112 = sphi 0, %s111
    %s126 = sphi 0, %s112
    %s130 = sphi 0, %s130
    %s132 = sphi 0, %s130
    %s133 = sphi 0, %s132
    %s147 = sphi 0, %s133
    %s153 = sphi 0, %s155
    %s156 = sphi 0, %s153
    %s157 = sphi 0, %s156
    %s173 = sphi 0, %s157
  $region4: #{residual_block_forward.1} parent=0 // loop_header_branch
    %15 = sbr.rel (%p13) target = $region8
  $region5: #{residual_block_forward.1} parent=0 // loop_body
    %s17 = ssub.s32 %s12, 1
    %s18 = ssub.s32 %s12, 2
    %s19 = sadd.s32 %s12, 1
    %s20 = ssub.s32 %s12, %s19
    %p21 = scmp.eq.s32.totalorder %s20, 0
    %s23 = sadd.s32 %s22, 1
    %s24 = scalar_select %p21, %s22, %s23
    %p27 = pneg %p21
    %p28 = scmp.eq.s32.totalorder %s12, 1
    %p29 = por %p27, %p28
    %p30 = scmp.ne.s32.totalorder %s22, %s25
    %p31 = scmp.eq.s32.totalorder %s12, 0
    %p32 = por %p30, %p31
    %p33 = scmp.ne.s32.totalorder %s22, %s25
    %p34 = scmp.eq.s32.totalorder %s17, 1
    %p35 = por %p33, %p34
    %p36 = scmp.ne.s32.totalorder %s25, %s26
    %p37 = scmp.eq.s32.totalorder %s17, 0
    %p38 = por %p36, %p37
    %p39 = scmp.ne.s32.totalorder %s25, %s26
    %p40 = scmp.eq.s32.totalorder %s18, 1
    %p41 = por %p39, %p40
    %p43 = scmp.ne.s32.totalorder %s26, %s42
    %p44 = scmp.eq.s32.totalorder %s18, 0
    %p45 = por %p43, %p44
    %s47 = sadd.s32 %s46, 1
    %p50 = scmp.eq.s32.totalorder %s12, 1
    %p51 = scmp.ne.s32.totalorder %s46, %s48
    %p52 = scmp.eq.s32.totalorder %s12, 0
    %p53 = por %p51, %p52
    %p54 = scmp.ne.s32.totalorder %s46, %s48
    %p55 = scmp.eq.s32.totalorder %s17, 1
    %p56 = por %p54, %p55
    %p57 = scmp.ne.s32.totalorder %s48, %s49
    %p58 = scmp.eq.s32.totalorder %s17, 0
    %p59 = por %p57, %p58
    %p60 = scmp.ne.s32.totalorder %s48, %s49
    %p61 = scmp.eq.s32.totalorder %s18, 1
    %p62 = por %p60, %p61
    %p64 = scmp.ne.s32.totalorder %s49, %s63
    %p65 = scmp.eq.s32.totalorder %s18, 0
    %p66 = por %p64, %p65
    %s68 = sadd.s32 %s67, 1
    %p71 = scmp.eq.s32.totalorder %s12, 1
    %p72 = scmp.ne.s32.totalorder %s67, %s69
    %p73 = scmp.eq.s32.totalorder %s12, 0
    %p74 = por %p72, %p73
    %p75 = scmp.ne.s32.totalorder %s67, %s69
    %p76 = scmp.eq.s32.totalorder %s17, 1
    %p77 = por %p75, %p76
    %p78 = scmp.ne.s32.totalorder %s69, %s70
    %p79 = scmp.eq.s32.totalorder %s17, 0
    %p80 = por %p78, %p79
    %p81 = scmp.ne.s32.totalorder %s69, %s70
    %p82 = scmp.eq.s32.totalorder %s18, 1
    %p83 = por %p81, %p82
    %p85 = scmp.ne.s32.totalorder %s70, %s84
    %p86 = scmp.eq.s32.totalorder %s18, 0
    %p87 = por %p85, %p86
    %s89 = sadd.s32 %s88, 1
    %p92 = scmp.eq.s32.totalorder %s12, 1
    %p93 = scmp.ne.s32.totalorder %s88, %s90
    %p94 = scmp.eq.s32.totalorder %s12, 0
    %p95 = por %p93, %p94
    %p96 = scmp.ne.s32.totalorder %s88, %s90
    %p97 = scmp.eq.s32.totalorder %s17, 1
    %p98 = por %p96, %p97
    %p99 = scmp.ne.s32.totalorder %s90, %s91
    %p100 = scmp.eq.s32.totalorder %s17, 0
    %p101 = por %p99, %p100
    %p102 = scmp.ne.s32.totalorder %s90, %s91
    %p103 = scmp.eq.s32.totalorder %s18, 1
    %p104 = por %p102, %p103
    %p106 = scmp.ne.s32.totalorder %s91, %s105
    %p107 = scmp.eq.s32.totalorder %s18, 0
    %p108 = por %p106, %p107
    %s110 = sadd.s32 %s109, 1
    %p113 = scmp.eq.s32.totalorder %s12, 1
    %p114 = scmp.ne.s32.totalorder %s109, %s111
    %p115 = scmp.eq.s32.totalorder %s12, 0
    %p116 = por %p114, %p115
    %p117 = scmp.ne.s32.totalorder %s109, %s111
    %p118 = scmp.eq.s32.totalorder %s17, 1
    %p119 = por %p117, %p118
    %p120 = scmp.ne.s32.totalorder %s111, %s112
    %p121 = scmp.eq.s32.totalorder %s17, 0
    %p122 = por %p120, %p121
    %p123 = scmp.ne.s32.totalorder %s111, %s112
    %p124 = scmp.eq.s32.totalorder %s18, 1
    %p125 = por %p123, %p124
    %p127 = scmp.ne.s32.totalorder %s112, %s126
    %p128 = scmp.eq.s32.totalorder %s18, 0
    %p129 = por %p127, %p128
    %s131 = sadd.s32 %s130, 1
    %p134 = scmp.eq.s32.totalorder %s12, 1
    %p135 = scmp.ne.s32.totalorder %s130, %s132
    %p136 = scmp.eq.s32.totalorder %s12, 0
    %p137 = por %p135, %p136
    %p138 = scmp.ne.s32.totalorder %s130, %s132
    %p139 = scmp.eq.s32.totalorder %s17, 1
    %p140 = por %p138, %p139
    %p141 = scmp.ne.s32.totalorder %s132, %s133
    %p142 = scmp.eq.s32.totalorder %s17, 0
    %p143 = por %p141, %p142
    %p144 = scmp.ne.s32.totalorder %s132, %s133
    %p145 = scmp.eq.s32.totalorder %s18, 1
    %p146 = por %p144, %p145
    %p148 = scmp.ne.s32.totalorder %s133, %s147
    %p149 = scmp.eq.s32.totalorder %s18, 0
    %p150 = por %p148, %p149
    %s151 = ssub.s32 %s12, %s19
    %p152 = scmp.eq.s32.totalorder %s151, 0
    %s154 = sadd.s32 %s153, 1
    %s155 = scalar_select %p152, %s153, %s154
    %p158 = pneg %p152
    %p159 = scmp.eq.s32.totalorder %s12, 1
    %p160 = por %p158, %p159
    %p161 = scmp.ne.s32.totalorder %s153, %s156
    %p162 = scmp.eq.s32.totalorder %s12, 0
    %p163 = por %p161, %p162
    %p164 = scmp.ne.s32.totalorder %s153, %s156
    %p165 = scmp.eq.s32.totalorder %s17, 1
    %p166 = por %p164, %p165
    %p167 = scmp.ne.s32.totalorder %s156, %s157
    %p168 = scmp.eq.s32.totalorder %s17, 0
    %p169 = por %p167, %p168
    %p170 = scmp.ne.s32.totalorder %s156, %s157
    %p171 = scmp.eq.s32.totalorder %s18, 1
    %p172 = por %p170, %p171
    %p174 = scmp.ne.s32.totalorder %s157, %s173
    %p175 = scmp.eq.s32.totalorder %s18, 0
    %p176 = por %p174, %p175
    %p177 = scmp.le.s32.totalorder 1, %s12
    %p178 = scmp.lt.s32.totalorder %s12, 3
    %p179 = pnand %p177, %p178
    %p180 = pneg %p179
    // Predicated region
    $region9: #{residual_block_forward.1} parent=5 // pred_check
      _
    $region10: #{residual_block_forward.1} parent=5 // pred_check_branch
      %182 = sbr.rel (%p179) target = $region12
    $region11: #{residual_block_forward.1} parent=5 // pred_region
      %s183 = ssub.s32 %s12, 1
      // Predicated region
      $region13: #{residual_block_forward.1} parent=11 // pred_check
        %p184 = pneg %p59
      $region14: #{residual_block_forward.1} parent=11 // pred_check_branch
        %186 = sbr.rel (%p184) target = $region16
      $region15: #{residual_block_forward.1} parent=11 // pred_region
        _
      $region16: #{residual_block_forward.1} parent=11 // pred_fallthru
        _
      // Predicated region
      $region17: #{residual_block_forward.1} parent=11 // pred_check
        %p187 = pneg %p80
      $region18: #{residual_block_forward.1} parent=11 // pred_check_branch
        %189 = sbr.rel (%p187) target = $region20
      $region19: #{residual_block_forward.1} parent=11 // pred_region
        _
      $region20: #{residual_block_forward.1} parent=11 // pred_fallthru
        _
      // Predicated region
      $region21: #{residual_block_forward.1} parent=11 // pred_check
        %p190 = pneg %p101
      $region22: #{residual_block_forward.1} parent=11 // pred_check_branch
        %192 = sbr.rel (%p190) target = $region24
      $region23: #{residual_block_forward.1} parent=11 // pred_region
        _
      $region24: #{residual_block_forward.1} parent=11 // pred_fallthru
        _
      // Predicated region
      $region25: #{residual_block_forward.1} parent=11 // pred_check
        %p193 = pneg %p122
      $region26: #{residual_block_forward.1} parent=11 // pred_check_branch
        %195 = sbr.rel (%p193) target = $region28
      $region27: #{residual_block_forward.1} parent=11 // pred_region
        _
      $region28: #{residual_block_forward.1} parent=11 // pred_fallthru
        _
      // Predicated region
      $region29: #{residual_block_forward.1} parent=11 // pred_check
        %p196 = pneg %p143
      $region30: #{residual_block_forward.1} parent=11 // pred_check_branch
        %198 = sbr.rel (%p196) target = $region32
      $region31: #{residual_block_forward.1} parent=11 // pred_region
        _
      $region32: #{residual_block_forward.1} parent=11 // pred_fallthru
        _
    $region12: #{residual_block_forward.1} parent=5 // pred_fallthru
      _
    %p199 = scmp.lt.s32.totalorder %s12, 2
    // Predicated region
    $region33: #{residual_block_forward.1} parent=5 // pred_check
      %p200 = pneg %p199
    $region34: #{residual_block_forward.1} parent=5 // pred_check_branch
      %202 = sbr.rel (%p200) target = $region36
    $region35: #{residual_block_forward.1} parent=5 // pred_region
      // Predicated region
      $region37: #{residual_block_forward.1} parent=35 // pred_check
        %p203 = pneg %p32
      $region38: #{residual_block_forward.1} parent=35 // pred_check_branch
        %205 = sbr.rel (%p203) target = $region40
      $region39: #{residual_block_forward.1} parent=35 // pred_region
        %p206 = scmp.lt.s32.totalorder %s12, 1
        %s207 = scalar_select %p206, %s12, 1
        %s208 = smul.addr %s207, 4
        %s209 = smul.addr %s208, 8
        %s210 = scalar_lea.vmem %s0, %s209
      $region40: #{residual_block_forward.1} parent=35 // pred_fallthru
        _
    $region36: #{residual_block_forward.1} parent=5 // pred_fallthru
      _
    %p211 = scmp.le.s32.totalorder 1, %s12
    %p212 = scmp.lt.s32.totalorder %s12, 3
    %p213 = pnand %p211, %p212
    %p214 = pneg %p213
    // Predicated region
    $region41: #{residual_block_forward.1} parent=5 // pred_check
      _
    $region42: #{residual_block_forward.1} parent=5 // pred_check_branch
      %216 = sbr.rel (%p213) target = $region44
    $region43: #{residual_block_forward.1} parent=5 // pred_region
      %s217 = ssub.s32 %s12, 1
      %p218 = scmp.lt.s32.totalorder %s17, 1
      %s219 = scalar_select %p218, %s17, 1
      %s220 = smul.addr %s219, 4
      %s221 = smul.addr %s220, 8
      %s222 = scalar_lea.vmem %s0, %s221
      %p223 = pneg %p38
      %p224 = pneg %p35
      %p225 = pneg %p59
      %p226 = pneg %p56
      %p227 = pneg %p80
      %p228 = pneg %p77
      %p229 = pneg %p101
      %p230 = pneg %p98
      %p231 = pneg %p122
      %p232 = pneg %p119
      %p233 = pneg %p143
      %p234 = pneg %p140
      %p235 = pneg %p169
      %p236 = pneg %p166
      %p237 = scmp.lt.s32.totalorder %s17, 1
      %s238 = scalar_select %p237, %s17, 1
      %s239 = smul.addr %s238, 4
      %s240 = smul.addr %s239, 8
      %s241 = scalar_lea.vmem %s6, %s240
      %p242 = scmp.lt.s32.totalorder %s17, 1
      %s243 = scalar_select %p242, %s17, 1
      %s244 = smul.addr %s243, 4
      %s245 = smul.addr %s244, 8
      %s246 = scalar_lea.vmem %s0, %s245
      %p247 = scmp.lt.s32.totalorder %s17, 1
      %s248 = scalar_select %p247, %s17, 1
      %s249 = smul.addr %s248, 4
      %s250 = smul.addr %s249, 8
      %s251 = scalar_lea.vmem %s6, %s250
      %v255 = vld [vmem:[%s4] sm:$0xff]
      %v256 = vld [vmem:[%s4 + $0x8] sm:$0xff]
      %v257 = vld [vmem:[%s3] sm:$0xff]
      %v258 = vld [vmem:[%s3 + $0x8] sm:$0xff]
      %v259 = vld [vmem:[%s1] sm:$0xff]
      %v260 = vld [vmem:[%s1 + $0x8] sm:$0xff]
      %v261 = vld [vmem:[%s2] sm:$0xff]
      %v262 = vld [vmem:[%s2 + $0x8] sm:$0xff]
      %v263 = vld [vmem:[%s5] sm:$0xf]
      %vm264 = vcmp.ne.f32.partialorder %v263, 0.0
      %v265 = vld [vmem:[%s246] sm:$0xff]
      %v266 = vld [vmem:[%s246 + $0x8] sm:$0xff]
      %v267 = vld [vmem:[%s246 + $0x10] sm:$0xff]
      %v268 = vld [vmem:[%s246 + $0x18] sm:$0xff]
      %v269 = vpack.c.bf16 %v267, %v265
      %v270 = vpack.c.bf16 %v268, %v266
      %v271 = vsel %vm264, 1, 0
      %v272 = vlaneseq
      %v273 = vshrl.u32 %v272, 7
      %v274 = vsub.s32 0, %v273
      %v275 = vrot.slane %v271, %v274
      %v276 = vlaneseq
      %v277 = vshrl.u32 %v276, 7
      %v278 = vsub.s32 2, %v277
      %v279 = vrot.slane %v271, %v278
      %v280 = vlaneseq
      %v281 = vshrl.u32 %v280, 7
      %v282 = vsub.s32 0, %v281
      %v283 = vrot.slane %v275, %v282
      %v284 = vlaneseq
      %v285 = vshrl.u32 %v284, 7
      %v286 = vsub.s32 0, %v285
      %v287 = vrot.slane %v279, %v286
      %vm288 = vcmp.eq.s32.totalorder %v283, 1
      %vm289 = vcmp.eq.s32.totalorder %v287, 1
      %vm290 = vmpackc.low %vm289, %vm288
      %v291 = vsel %vm290, 65537, 0
      %v292 = vlaneseq
      %v293 = vshrl.u32 %v292, 7
      %v294 = vsub.s32 0, %v293
      %v295 = vrot.slane %v291, %v294
      %v296 = vlaneseq
      %v297 = vshrl.u32 %v296, 7
      %v298 = vsub.s32 4, %v297
      %v299 = vrot.slane %v291, %v298
      %vm300 = vcmp.ne.s16.totalorder %v295, 0
      %vm301 = vcmp.ne.s16.totalorder %v299, 0
      %v302 = vsel %vm300, %v269, 0
      %v303 = vsel %vm301, %v270, 0
      %v304 = vlaneseq
      %v305 = vshrl.u32 %v304, 7
      %v306 = vsub.s32 1, %v305
      %v307 = vrot.slane %v271, %v306
      %v308 = vlaneseq
      %v309 = vshrl.u32 %v308, 7
      %v310 = vsub.s32 3, %v309
      %v311 = vrot.slane %v271, %v310
      %v312 = vlaneseq
      %v313 = vshrl.u32 %v312, 7
      %v314 = vsub.s32 1, %v313
      %v315 = vrot.slane %v307, %v314
      %v316 = vlaneseq
      %v317 = vshrl.u32 %v316, 7
      %v318 = vsub.s32 1, %v317
      %v319 = vrot.slane %v311, %v318
      %vm320 = vcmp.eq.s32.totalorder %v315, 1
      %vm321 = vcmp.eq.s32.totalorder %v319, 1
      %vm322 = vmpackc.low %vm321, %vm320
      %v323 = vsel %vm322, 65537, 0
      %v324 = vlaneseq
      %v325 = vshrl.u32 %v324, 7
      %v326 = vsub.s32 0, %v325
      %v327 = vrot.slane %v323, %v326
      %v328 = vlaneseq
      %v329 = vshrl.u32 %v328, 7
      %v330 = vsub.s32 4, %v329
      %v331 = vrot.slane %v323, %v330
      %vm332 = vcmp.ne.s16.totalorder %v327, 0
      %vm333 = vcmp.ne.s16.totalorder %v331, 0
      %v334 = vsel %vm332, %v269, 0
      %v335 = vsel %vm333, %v270, 0
      %338 = vrot.lane.b32.xlu0 %v302, 17
      %v339 = vpop.permute.xlu0 %338
      %340 = vrot.lane.b32.xlu0 %v303, 17
      %v341 = vpop.permute.xlu0 %340
      %vm342 = vcmask 138240
      %v343 = vsel %vm342, %v339, %v341
      %vm345 = vcmask 138240
      %v348 = vsel %vm345, 0, %v339
      %352 = vrot.lane.b32.xlu0 %v269, 16
      %v353 = vpop.permute.xlu0 %352
      %354 = vrot.lane.b32.xlu0 %v270, 16
      %v355 = vpop.permute.xlu0 %354
      %vm356 = vcmask 130048
      %v357 = vsel %vm356, %v353, %v355
      %vm359 = vcmask 130048
      %v361 = vsel %vm359, 0, %v353
      %365 = vrot.lane.b32.xlu0 %v334, 15
      %v366 = vpop.permute.xlu0 %365
      %367 = vrot.lane.b32.xlu0 %v335, 15
      %v368 = vpop.permute.xlu0 %367
      %vm369 = vcmask 121856
      %v370 = vsel %vm369, %v366, %v368
      %vm372 = vcmask 121856
      %v374 = vsel %vm372, 0, %v366
      %376 = vrot.lane.b32.xlu0 %v302, 1
      %v377 = vpop.permute.xlu0 %376
      %378 = vrot.lane.b32.xlu0 %v303, 1
      %v379 = vpop.permute.xlu0 %378
      %vm380 = vcmask 7168
      %v381 = vsel %vm380, %v377, %v379
      %vm383 = vcmask 7168
      %v385 = vsel %vm383, 0, %v377
      %387 = vrot.lane.b32.xlu0 %v334, 127
      %v388 = vpop.permute.xlu0 %387
      %389 = vrot.lane.b32.xlu0 %v335, 127
      %v390 = vpop.permute.xlu0 %389
      %vm391 = vcmask 1039360
      %v392 = vsel %vm391, %v388, %v390
      %vm394 = vcmask 1039360
      %v396 = vsel %vm394, %v390, 0
      %398 = vrot.lane.b32.xlu0 %v302, 113
      %v399 = vpop.permute.xlu0 %398
      %400 = vrot.lane.b32.xlu0 %v303, 113
      %v401 = vpop.permute.xlu0 %400
      %vm402 = vcmask 924672
      %v403 = vsel %vm402, %v399, %v401
      %vm405 = vcmask 924672
      %v407 = vsel %vm405, %v401, 0
      %409 = vrot.lane.b32.xlu0 %v269, 112
      %v410 = vpop.permute.xlu0 %409
      %411 = vrot.lane.b32.xlu0 %v270, 112
      %v412 = vpop.permute.xlu0 %411
      %vm413 = vcmask 916480
      %v414 = vsel %vm413, %v410, %v412
      %vm416 = vcmask 916480
      %v418 = vsel %vm416, %v412, 0
      %420 = vrot.lane.b32.xlu0 %v334, 111
      %v421 = vpop.permute.xlu0 %420
      %422 = vrot.lane.b32.xlu0 %v335, 111
      %v423 = vpop.permute.xlu0 %422
      %vm424 = vcmask 908288
      %v425 = vsel %vm424, %v421, %v423
      %vm427 = vcmask 908288
      %v429 = vsel %vm427, %v423, 0
      %v433 = vunpack.c.l.b16 %v259
      %v434 = vunpack.c.h.b16 %v259
      %v435 = vunpack.c.l.b16 %v260
      %v436 = vunpack.c.h.b16 %v260
      %v437 = vpack.c.b16 %v435, %v433
      %v438 = vpack.c.b16 %v436, %v434
      %v441 = vsel %vm359, %v438, 0
      %443 = vmatprep.subr.bf16.mxu0 %v343
      %444 = vmatpush1.bf16.msra.mxu0 %v348
      %445 = vmatprep.subr.bf16.mxu0 %v357
      %446 = vmatpush1.bf16.msra.mxu0 %v361
      %447 = vmatprep.subr.bf16.mxu0 %v370
      %448 = vmatpush1.bf16.msra.mxu0 %v374
      %449 = vmatprep.subr.bf16.mxu0 %v381
      %450 = vmatpush1.bf16.msra.mxu0 %v385
      %451 = vmatprep.subr.bf16.mxu0 %v270
      %452 = vmatpush1.bf16.msra.mxu0 %v269
      %453 = vmatprep.subr.bf16.mxu0 %v396
      %454 = vmatpush1.bf16.msra.mxu0 %v392
      %455 = vmatprep.subr.bf16.mxu0 %v407
      %456 = vmatpush1.bf16.msra.mxu0 %v403
      %457 = vmatprep.subr.bf16.mxu0 %v418
      %458 = vmatpush1.bf16.msra.mxu0 %v414
      %459 = vmatprep.subr.bf16.mxu0 %v429
      %460 = vmatpush1.bf16.msra.mxu0 %v425
      %461 = vmatprep.subr.bf16.mxu0 0
      %462 = vmatpush1.bf16.msra.mxu0 0
      %463 = vmatprep.subr.bf16.mxu0 0
      %464 = vmatpush1.bf16.msra.mxu0 0
      %465 = vmatprep.subr.bf16.mxu0 0
      %466 = vmatpush1.bf16.msra.mxu0 0
      %467 = vmatprep.subr.bf16.mxu0 0
      %468 = vmatpush1.bf16.msra.mxu0 0
      %469 = vmatprep.subr.bf16.mxu0 0
      %470 = vmatpush1.bf16.msra.mxu0 0
      %471 = vmatprep.subr.bf16.mxu0 0
      %472 = vmatpush1.bf16.msra.mxu0 0
      %473 = vmatprep.subr.bf16.mxu0 0
      %474 = vmatpush1.bf16.msra.mxu0 0
      %475 = vmatprep.mubr.bf16.mxu0 %v441
      %476 = vmatmul.mubr.bf16.gmra.mrb[0].mxu0 %v437
      %v477 = vpop.f32.mrb[0].mxu0
      %v478 = vadd.f32 0.0, %v477
      %v479 = vpop.f32.mrb[0].mxu0
      %v480 = vadd.f32 0.0, %v479
      %v481 = vpop.f32.mrb[0].mxu0
      %v482 = vadd.f32 0.0, %v481
      %v483 = vpop.f32.mrb[0].mxu0
      %v484 = vadd.f32 0.0, %v483
      %485 = vdwg.mxu0
      %v486 = vadd.f32 %v478, %v480
      %487 = vadd.xlane.f32.xlu0 %v486
      %v488 = vpop.xlane.xlu0 %487
      %v489 = vadd.f32 %v482, %v484
      %490 = vadd.xlane.f32.xlu0 %v489
      %v491 = vpop.xlane.xlu0 %490
      %v492 = vmul.f32 %v257, 256.0
      %v493 = vmul.f32 %v258, 256.0
      %v494 = vadd.f32 %v488, %v492
      %v495 = vadd.f32 %v491, %v493
      %v497 = vsel %vm359, %v255, 0
      %v500 = vsel %vm359, %v256, 0
      %502 = vmatprep.subr.mxu0 0.0
      %503 = vmatpush1.msra.mxu0 %v494
      %504 = vmatprep.subr.mxu0 0.0
      %505 = vmatpush1.msra.mxu0 %v495
      %506 = vmatprep.subr.mxu0 0.0
      %507 = vmatpush1.msra.mxu0 0.0
      %508 = vmatprep.subr.mxu0 0.0
      %509 = vmatpush1.msra.mxu0 0.0
      %510 = vmatprep.subr.mxu0 0.0
      %511 = vmatpush1.msra.mxu0 0.0
      %512 = vmatprep.subr.mxu0 0.0
      %513 = vmatpush1.msra.mxu0 0.0
      %514 = vmatprep.subr.mxu0 0.0
      %515 = vmatpush1.msra.mxu0 0.0
      %516 = vmatprep.subr.mxu0 0.0
      %517 = vmatpush1.msra.mxu0 0.0
      %518 = vmatprep.subr.mxu0 0.0
      %519 = vmatpush1.msra.mxu0 0.0
      %520 = vmatprep.subr.mxu0 0.0
      %521 = vmatpush1.msra.mxu0 0.0
      %522 = vmatprep.subr.mxu0 0.0
      %523 = vmatpush1.msra.mxu0 0.0
      %524 = vmatprep.subr.mxu0 0.0
      %525 = vmatpush1.msra.mxu0 0.0
      %526 = vmatprep.subr.mxu0 0.0
      %527 = vmatpush1.msra.mxu0 0.0
      %528 = vmatprep.subr.mxu0 0.0
      %529 = vmatpush1.msra.mxu0 0.0
      %530 = vmatprep.subr.mxu0 0.0
      %531 = vmatpush1.msra.mxu0 0.0
      %532 = vmatprep.subr.mxu0 0.0
      %533 = vmatpush1.msra.mxu0 0.0
      %534 = vmatprep.subr.mxu0 0.0
      %535 = vmatpush1.msra.mxu0 0.0
      %536 = vmatprep.subr.mxu0 0.0
      %537 = vmatpush1.msra.mxu0 0.0
      %538 = vmatprep.subr.mxu0 0.0
      %539 = vmatpush1.msra.mxu0 0.0
      %540 = vmatprep.subr.mxu0 0.0
      %541 = vmatpush1.msra.mxu0 0.0
      %542 = vmatprep.subr.mxu0 0.0
      %543 = vmatpush1.msra.mxu0 0.0
      %544 = vmatprep.subr.mxu0 0.0
      %545 = vmatpush1.msra.mxu0 0.0
      %546 = vmatprep.subr.mxu0 0.0
      %547 = vmatpush1.msra.mxu0 0.0
      %548 = vmatprep.subr.mxu0 0.0
      %549 = vmatpush1.msra.mxu0 0.0
      %550 = vmatprep.subr.mxu0 0.0
      %551 = vmatpush1.msra.mxu0 0.0
      %552 = vmatprep.subr.mxu0 0.0
      %553 = vmatpush1.msra.mxu0 0.0
      %554 = vmatprep.subr.mxu0 0.0
      %555 = vmatpush1.msra.mxu0 0.0
      %556 = vmatprep.subr.mxu0 0.0
      %557 = vmatpush1.msra.mxu0 0.0
      %558 = vmatprep.subr.mxu0 0.0
      %559 = vmatpush1.msra.mxu0 0.0
      %560 = vmatprep.subr.mxu0 0.0
      %561 = vmatpush1.msra.mxu0 0.0
      %562 = vmatprep.subr.mxu0 0.0
      %563 = vmatpush1.msra.mxu0 0.0
      %564 = vmatprep.subr.mxu0 0.0
      %565 = vmatpush1.msra.mxu0 0.0
      %566 = vmatprep.mubr.f32.mxu0 0.0
      %567 = vmatmul.mubr.f32.gmra.mrb[0].mxu0 %v497
      %v568 = vpop.f32.mrb[0].mxu0
      %v569 = vadd.f32 0.0, %v568
      %v570 = vpop.f32.mrb[0].mxu0
      %571 = vmatprep.mubr.f32.mxu0 0.0
      %572 = vmatmul.mubr.f32.gmra.mrb[0].mxu0 %v500
      %v573 = vpop.f32.mrb[0].mxu0
      %v574 = vadd.f32 0.0, %v573
      %v575 = vpop.f32.mrb[0].mxu0
      %576 = vdwg.mxu0
      %v577 = vsub.f32 %v569, %v257
      %v578 = vsub.f32 %v574, %v258
      %580 = vset.pattern.permute.xlu0 0
      %581 = vperm.xlu0 %580, %v577
      %v582 = vpop.permute.xlu0 %581
      %585 = vset.pattern.permute.xlu0 0
      %586 = vperm.xlu0 %585, %v578
      %v587 = vpop.permute.xlu0 %586
      %v589 = vsub.f32 %v478, %v582
      %v590 = vsub.f32 %v480, %v582
      %v591 = vsub.f32 %v482, %v587
      %v592 = vsub.f32 %v484, %v587
      %v593 = vmul.f32 %v589, %v589
      %v594 = vmul.f32 %v590, %v590
      %v595 = vmul.f32 %v591, %v591
      %v596 = vmul.f32 %v592, %v592
      %v597 = vadd.f32 %v593, %v594
      %598 = vadd.xlane.f32.xlu0 %v597
      %v599 = vpop.xlane.xlu0 %598
      %v600 = vadd.f32 %v595, %v596
      %601 = vadd.xlane.f32.xlu0 %v600
      %v602 = vpop.xlane.xlu0 %601
      %603 = vmatprep.subr.mxu0 0.0
      %604 = vmatpush1.msra.mxu0 %v599
      %605 = vmatprep.subr.mxu0 0.0
      %606 = vmatpush1.msra.mxu0 %v602
      %607 = vmatprep.subr.mxu0 0.0
      %608 = vmatpush1.msra.mxu0 0.0
      %609 = vmatprep.subr.mxu0 0.0
      %610 = vmatpush1.msra.mxu0 0.0
      %611 = vmatprep.subr.mxu0 0.0
      %612 = vmatpush1.msra.mxu0 0.0
      %613 = vmatprep.subr.mxu0 0.0
      %614 = vmatpush1.msra.mxu0 0.0
      %615 = vmatprep.subr.mxu0 0.0
      %616 = vmatpush1.msra.mxu0 0.0
      %617 = vmatprep.subr.mxu0 0.0
      %618 = vmatpush1.msra.mxu0 0.0
      %619 = vmatprep.subr.mxu0 0.0
      %620 = vmatpush1.msra.mxu0 0.0
      %621 = vmatprep.subr.mxu0 0.0
      %622 = vmatpush1.msra.mxu0 0.0
      %623 = vmatprep.subr.mxu0 0.0
      %624 = vmatpush1.msra.mxu0 0.0
      %625 = vmatprep.subr.mxu0 0.0
      %626 = vmatpush1.msra.mxu0 0.0
      %627 = vmatprep.subr.mxu0 0.0
      %628 = vmatpush1.msra.mxu0 0.0
      %629 = vmatprep.subr.mxu0 0.0
      %630 = vmatpush1.msra.mxu0 0.0
      %631 = vmatprep.subr.mxu0 0.0
      %632 = vmatpush1.msra.mxu0 0.0
      %633 = vmatprep.subr.mxu0 0.0
      %634 = vmatpush1.msra.mxu0 0.0
      %635 = vmatprep.subr.mxu0 0.0
      %636 = vmatpush1.msra.mxu0 0.0
      %637 = vmatprep.subr.mxu0 0.0
      %638 = vmatpush1.msra.mxu0 0.0
      %639 = vmatprep.subr.mxu0 0.0
      %640 = vmatpush1.msra.mxu0 0.0
      %641 = vmatprep.subr.mxu0 0.0
      %642 = vmatpush1.msra.mxu0 0.0
      %643 = vmatprep.subr.mxu0 0.0
      %644 = vmatpush1.msra.mxu0 0.0
      %645 = vmatprep.subr.mxu0 0.0
      %646 = vmatpush1.msra.mxu0 0.0
      %647 = vmatprep.subr.mxu0 0.0
      %648 = vmatpush1.msra.mxu0 0.0
      %649 = vmatprep.subr.mxu0 0.0
      %650 = vmatpush1.msra.mxu0 0.0
      %651 = vmatprep.subr.mxu0 0.0
      %652 = vmatpush1.msra.mxu0 0.0
      %653 = vmatprep.subr.mxu0 0.0
      %654 = vmatpush1.msra.mxu0 0.0
      %655 = vmatprep.subr.mxu0 0.0
      %656 = vmatpush1.msra.mxu0 0.0
      %657 = vmatprep.subr.mxu0 0.0
      %658 = vmatpush1.msra.mxu0 0.0
      %659 = vmatprep.subr.mxu0 0.0
      %660 = vmatpush1.msra.mxu0 0.0
      %661 = vmatprep.subr.mxu0 0.0
      %662 = vmatpush1.msra.mxu0 0.0
      %663 = vmatprep.subr.mxu0 0.0
      %664 = vmatpush1.msra.mxu0 0.0
      %665 = vmatprep.subr.mxu0 0.0
      %666 = vmatpush1.msra.mxu0 0.0
      %667 = vmatprep.mubr.f32.mxu0 0.0
      %668 = vmatmul.mubr.f32.gmra.mrb[0].mxu0 %v497
      %v669 = vpop.f32.mrb[0].mxu0
      %v670 = vadd.f32 1e-05, %v669
      %v671 = vpop.f32.mrb[0].mxu0
      %672 = vmatprep.mubr.f32.mxu0 0.0
      %673 = vmatmul.mubr.f32.gmra.mrb[0].mxu0 %v500
      %v674 = vpop.f32.mrb[0].mxu0
      %v675 = vadd.f32 1e-05, %v674
      %v676 = vpop.f32.mrb[0].mxu0
      %677 = vdwg.mxu0
      %v678 = vrsqrt.pop %v670
      %v679 = vrsqrt.pop %v675
      %682 = vrot.lane.b32.xlu0 %v257, 127
      %v683 = vpop.permute.xlu0 %682
      %684 = vrot.lane.b32.xlu0 %v258, 127
      %v685 = vpop.permute.xlu0 %684
      %v688 = vmul.f32 %v678, %v683
      %v689 = vmul.f32 %v679, %v685
      %691 = vset.pattern.permute.xlu0 0
      %692 = vperm.xlu0 %691, %v688
      %v693 = vpop.permute.xlu0 %692
      %696 = vset.pattern.permute.xlu0 0
      %697 = vperm.xlu0 %696, %v689
      %v698 = vpop.permute.xlu0 %697
      %v700 = vmul.f32 %v589, %v693
      %v701 = vmul.f32 %v590, %v693
      %v702 = vmul.f32 %v591, %v698
      %v703 = vmul.f32 %v592, %v698
      %704 = vset.pattern.permute.xlu0 2
      %705 = vperm.xlu0 %704, %v257
      %v706 = vpop.permute.xlu0 %705
      %708 = vset.pattern.permute.xlu0 2
      %709 = vperm.xlu0 %708, %v258
      %v710 = vpop.permute.xlu0 %709
      %v712 = vadd.f32 %v700, %v706
      %v713 = vadd.f32 %v701, %v706
      %v714 = vadd.f32 %v702, %v710
      %v715 = vadd.f32 %v703, %v710
      %v716 = vmax.f32 %v712, 0.0
      %v717 = vmax.f32 %v713, 0.0
      %v718 = vmax.f32 %v714, 0.0
      %v719 = vmax.f32 %v715, 0.0
      %v720 = vpack.c.bf16 %v718, %v716
      %v721 = vpack.c.bf16 %v719, %v717
      %v722 = vsel %vm300, %v720, 0
      %v723 = vsel %vm301, %v721, 0
      %v724 = vsel %vm332, %v720, 0
      %v725 = vsel %vm333, %v721, 0
      %728 = vrot.lane.b32.xlu0 %v722, 17
      %v729 = vpop.permute.xlu0 %728
      %730 = vrot.lane.b32.xlu0 %v723, 17
      %v731 = vpop.permute.xlu0 %730
      %v732 = vsel %vm342, %v729, %v731
      %v735 = vsel %vm345, 0, %v729
      %739 = vrot.lane.b32.xlu0 %v720, 16
      %v740 = vpop.permute.xlu0 %739
      %741 = vrot.lane.b32.xlu0 %v721, 16
      %v742 = vpop.permute.xlu0 %741
      %v743 = vsel %vm356, %v740, %v742
      %v746 = vsel %vm359, 0, %v740
      %750 = vrot.lane.b32.xlu0 %v724, 15
      %v751 = vpop.permute.xlu0 %750
      %752 = vrot.lane.b32.xlu0 %v725, 15
      %v753 = vpop.permute.xlu0 %752
      %v754 = vsel %vm369, %v751, %v753
      %v757 = vsel %vm372, 0, %v751
      %759 = vrot.lane.b32.xlu0 %v722, 1
      %v760 = vpop.permute.xlu0 %759
      %761 = vrot.lane.b32.xlu0 %v723, 1
      %v762 = vpop.permute.xlu0 %761
      %v763 = vsel %vm380, %v760, %v762
      %v766 = vsel %vm383, 0, %v760
      %768 = vrot.lane.b32.xlu0 %v724, 127
      %v769 = vpop.permute.xlu0 %768
      %770 = vrot.lane.b32.xlu0 %v725, 127
      %v771 = vpop.permute.xlu0 %770
      %v772 = vsel %vm391, %v769, %v771
      %v775 = vsel %vm394, %v771, 0
      %777 = vrot.lane.b32.xlu0 %v722, 113
      %v778 = vpop.permute.xlu0 %777
      %779 = vrot.lane.b32.xlu0 %v723, 113
      %v780 = vpop.permute.xlu0 %779
      %v781 = vsel %vm402, %v778, %v780
      %v784 = vsel %vm405, %v780, 0
      %786 = vrot.lane.b32.xlu0 %v720, 112
      %v787 = vpop.permute.xlu0 %786
      %788 = vrot.lane.b32.xlu0 %v721, 112
      %v789 = vpop.permute.xlu0 %788
      %v790 = vsel %vm413, %v787, %v789
      %v793 = vsel %vm416, %v789, 0
      %795 = vrot.lane.b32.xlu0 %v724, 111
      %v796 = vpop.permute.xlu0 %795
      %797 = vrot.lane.b32.xlu0 %v725, 111
      %v798 = vpop.permute.xlu0 %797
      %v799 = vsel %vm424, %v796, %v798
      %v802 = vsel %vm427, %v798, 0
      %v806 = vunpack.c.l.b16 %v261
      %v807 = vunpack.c.h.b16 %v261
      %v808 = vunpack.c.l.b16 %v262
      %v809 = vunpack.c.h.b16 %v262
      %v810 = vpack.c.b16 %v808, %v806
      %v811 = vpack.c.b16 %v809, %v807
      %v814 = vsel %vm359, %v811, 0
      %816 = vmatprep.subr.bf16.mxu0 %v732
      %817 = vmatpush1.bf16.msra.mxu0 %v735
      %818 = vmatprep.subr.bf16.mxu0 %v743
      %819 = vmatpush1.bf16.msra.mxu0 %v746
      %820 = vmatprep.subr.bf16.mxu0 %v754
      %821 = vmatpush1.bf16.msra.mxu0 %v757
      %822 = vmatprep.subr.bf16.mxu0 %v763
      %823 = vmatpush1.bf16.msra.mxu0 %v766
      %824 = vmatprep.subr.bf16.mxu0 %v721
      %825 = vmatpush1.bf16.msra.mxu0 %v720
      %826 = vmatprep.subr.bf16.mxu0 %v775
      %827 = vmatpush1.bf16.msra.mxu0 %v772
      %828 = vmatprep.subr.bf16.mxu0 %v784
      %829 = vmatpush1.bf16.msra.mxu0 %v781
      %830 = vmatprep.subr.bf16.mxu0 %v793
      %831 = vmatpush1.bf16.msra.mxu0 %v790
      %832 = vmatprep.subr.bf16.mxu0 %v802
      %833 = vmatpush1.bf16.msra.mxu0 %v799
      %834 = vmatprep.subr.bf16.mxu0 0
      %835 = vmatpush1.bf16.msra.mxu0 0
      %836 = vmatprep.subr.bf16.mxu0 0
      %837 = vmatpush1.bf16.msra.mxu0 0
      %838 = vmatprep.subr.bf16.mxu0 0
      %839 = vmatpush1.bf16.msra.mxu0 0
      %840 = vmatprep.subr.bf16.mxu0 0
      %841 = vmatpush1.bf16.msra.mxu0 0
      %842 = vmatprep.subr.bf16.mxu0 0
      %843 = vmatpush1.bf16.msra.mxu0 0
      %844 = vmatprep.subr.bf16.mxu0 0
      %845 = vmatpush1.bf16.msra.mxu0 0
      %846 = vmatprep.subr.bf16.mxu0 0
      %847 = vmatpush1.bf16.msra.mxu0 0
      %848 = vmatprep.mubr.bf16.mxu0 %v814
      %849 = vmatmul.mubr.bf16.gmra.mrb[0].mxu0 %v810
      %v850 = vpop.f32.mrb[0].mxu0
      %v851 = vadd.f32 0.0, %v850
      %v852 = vpop.f32.mrb[0].mxu0
      %v853 = vadd.f32 0.0, %v852
      %v854 = vpop.f32.mrb[0].mxu0
      %v855 = vadd.f32 0.0, %v854
      %v856 = vpop.f32.mrb[0].mxu0
      %v857 = vadd.f32 0.0, %v856
      %858 = vdwg.mxu0
      %v859 = vadd.f32 %v851, %v853
      %860 = vadd.xlane.f32.xlu0 %v859
      %v861 = vpop.xlane.xlu0 %860
      %v862 = vadd.f32 %v855, %v857
      %863 = vadd.xlane.f32.xlu0 %v862
      %v864 = vpop.xlane.xlu0 %863
      %v865 = vadd.f32 %v861, %v492
      %v866 = vadd.f32 %v864, %v493
      %869 = vrot.lane.b32.xlu0 %v865, 125
      %v870 = vpop.permute.xlu0 %869
      %871 = vrot.lane.b32.xlu0 %v866, 125
      %v872 = vpop.permute.xlu0 %871
      %875 = vmatprep.subr.mxu0 0.0
      %876 = vmatpush1.msra.mxu0 %v870
      %877 = vmatprep.subr.mxu0 0.0
      %878 = vmatpush1.msra.mxu0 %v872
      %879 = vmatprep.subr.mxu0 0.0
      %880 = vmatpush1.msra.mxu0 0.0
      %881 = vmatprep.subr.mxu0 0.0
      %882 = vmatpush1.msra.mxu0 0.0
      %883 = vmatprep.subr.mxu0 0.0
      %884 = vmatpush1.msra.mxu0 0.0
      %885 = vmatprep.subr.mxu0 0.0
      %886 = vmatpush1.msra.mxu0 0.0
      %887 = vmatprep.subr.mxu0 0.0
      %888 = vmatpush1.msra.mxu0 0.0
      %889 = vmatprep.subr.mxu0 0.0
      %890 = vmatpush1.msra.mxu0 0.0
      %891 = vmatprep.subr.mxu0 0.0
      %892 = vmatpush1.msra.mxu0 0.0
      %893 = vmatprep.subr.mxu0 0.0
      %894 = vmatpush1.msra.mxu0 0.0
      %895 = vmatprep.subr.mxu0 0.0
      %896 = vmatpush1.msra.mxu0 0.0
      %897 = vmatprep.subr.mxu0 0.0
      %898 = vmatpush1.msra.mxu0 0.0
      %899 = vmatprep.subr.mxu0 0.0
      %900 = vmatpush1.msra.mxu0 0.0
      %901 = vmatprep.subr.mxu0 0.0
      %902 = vmatpush1.msra.mxu0 0.0
      %903 = vmatprep.subr.mxu0 0.0
      %904 = vmatpush1.msra.mxu0 0.0
      %905 = vmatprep.subr.mxu0 0.0
      %906 = vmatpush1.msra.mxu0 0.0
      %907 = vmatprep.subr.mxu0 0.0
      %908 = vmatpush1.msra.mxu0 0.0
      %909 = vmatprep.subr.mxu0 0.0
      %910 = vmatpush1.msra.mxu0 0.0
      %911 = vmatprep.subr.mxu0 0.0
      %912 = vmatpush1.msra.mxu0 0.0
      %913 = vmatprep.subr.mxu0 0.0
      %914 = vmatpush1.msra.mxu0 0.0
      %915 = vmatprep.subr.mxu0 0.0
      %916 = vmatpush1.msra.mxu0 0.0
      %917 = vmatprep.subr.mxu0 0.0
      %918 = vmatpush1.msra.mxu0 0.0
      %919 = vmatprep.subr.mxu0 0.0
      %920 = vmatpush1.msra.mxu0 0.0
      %921 = vmatprep.subr.mxu0 0.0
      %922 = vmatpush1.msra.mxu0 0.0
      %923 = vmatprep.subr.mxu0 0.0
      %924 = vmatpush1.msra.mxu0 0.0
      %925 = vmatprep.subr.mxu0 0.0
      %926 = vmatpush1.msra.mxu0 0.0
      %927 = vmatprep.subr.mxu0 0.0
      %928 = vmatpush1.msra.mxu0 0.0
      %929 = vmatprep.subr.mxu0 0.0
      %930 = vmatpush1.msra.mxu0 0.0
      %931 = vmatprep.subr.mxu0 0.0
      %932 = vmatpush1.msra.mxu0 0.0
      %933 = vmatprep.subr.mxu0 0.0
      %934 = vmatpush1.msra.mxu0 0.0
      %935 = vmatprep.subr.mxu0 0.0
      %936 = vmatpush1.msra.mxu0 0.0
      %937 = vmatprep.subr.mxu0 0.0
      %938 = vmatpush1.msra.mxu0 0.0
      %939 = vmatprep.mubr.f32.mxu0 0.0
      %940 = vmatmul.mubr.f32.gmra.mrb[0].mxu0 %v497
      %v941 = vpop.f32.mrb[0].mxu0
      %v942 = vadd.f32 0.0, %v941
      %v943 = vpop.f32.mrb[0].mxu0
      %944 = vmatprep.mubr.f32.mxu0 0.0
      %945 = vmatmul.mubr.f32.gmra.mrb[0].mxu0 %v500
      %v946 = vpop.f32.mrb[0].mxu0
      %v947 = vadd.f32 0.0, %v946
      %v948 = vpop.f32.mrb[0].mxu0
      %949 = vdwg.mxu0
      %950 = vrot.lane.b32.xlu0 %v257, 125
      %v951 = vpop.permute.xlu0 %950
      %952 = vrot.lane.b32.xlu0 %v258, 125
      %v953 = vpop.permute.xlu0 %952
      %v956 = vsub.f32 %v942, %v951
      %v957 = vsub.f32 %v947, %v953
      %959 = vset.pattern.permute.xlu0 0
      %960 = vperm.xlu0 %959, %v956
      %v961 = vpop.permute.xlu0 %960
      %964 = vset.pattern.permute.xlu0 0
      %965 = vperm.xlu0 %964, %v957
      %v966 = vpop.permute.xlu0 %965
      %v968 = vsub.f32 %v851, %v961
      %v969 = vsub.f32 %v853, %v961
      %v970 = vsub.f32 %v855, %v966
      %v971 = vsub.f32 %v857, %v966
      %v972 = vmul.f32 %v968, %v968
      %v973 = vmul.f32 %v969, %v969
      %v974 = vmul.f32 %v970, %v970
      %v975 = vmul.f32 %v971, %v971
      %v976 = vadd.f32 %v972, %v973
      %977 = vadd.xlane.f32.xlu0 %v976
      %v978 = vpop.xlane.xlu0 %977
      %v979 = vadd.f32 %v974, %v975
      %980 = vadd.xlane.f32.xlu0 %v979
      %v981 = vpop.xlane.xlu0 %980
      %982 = vmatprep.subr.mxu0 0.0
      %983 = vmatpush1.msra.mxu0 %v978
      %984 = vmatprep.subr.mxu0 0.0
      %985 = vmatpush1.msra.mxu0 %v981
      %986 = vmatprep.subr.mxu0 0.0
      %987 = vmatpush1.msra.mxu0 0.0
      %988 = vmatprep.subr.mxu0 0.0
      %989 = vmatpush1.msra.mxu0 0.0
      %990 = vmatprep.subr.mxu0 0.0
      %991 = vmatpush1.msra.mxu0 0.0
      %992 = vmatprep.subr.mxu0 0.0
      %993 = vmatpush1.msra.mxu0 0.0
      %994 = vmatprep.subr.mxu0 0.0
      %995 = vmatpush1.msra.mxu0 0.0
      %996 = vmatprep.subr.mxu0 0.0
      %997 = vmatpush1.msra.mxu0 0.0
      %998 = vmatprep.subr.mxu0 0.0
      %999 = vmatpush1.msra.mxu0 0.0
      %1000 = vmatprep.subr.mxu0 0.0
      %1001 = vmatpush1.msra.mxu0 0.0
      %1002 = vmatprep.subr.mxu0 0.0
      %1003 = vmatpush1.msra.mxu0 0.0
      %1004 = vmatprep.subr.mxu0 0.0
      %1005 = vmatpush1.msra.mxu0 0.0
      %1006 = vmatprep.subr.mxu0 0.0
      %1007 = vmatpush1.msra.mxu0 0.0
      %1008 = vmatprep.subr.mxu0 0.0
      %1009 = vmatpush1.msra.mxu0 0.0
      %1010 = vmatprep.subr.mxu0 0.0
      %1011 = vmatpush1.msra.mxu0 0.0
      %1012 = vmatprep.subr.mxu0 0.0
      %1013 = vmatpush1.msra.mxu0 0.0
      %1014 = vmatprep.subr.mxu0 0.0
      %1015 = vmatpush1.msra.mxu0 0.0
      %1016 = vmatprep.subr.mxu0 0.0
      %1017 = vmatpush1.msra.mxu0 0.0
      %1018 = vmatprep.subr.mxu0 0.0
      %1019 = vmatpush1.msra.mxu0 0.0
      %1020 = vmatprep.subr.mxu0 0.0
      %1021 = vmatpush1.msra.mxu0 0.0
      %1022 = vmatprep.subr.mxu0 0.0
      %1023 = vmatpush1.msra.mxu0 0.0
      %1024 = vmatprep.subr.mxu0 0.0
      %1025 = vmatpush1.msra.mxu0 0.0
      %1026 = vmatprep.subr.mxu0 0.0
      %1027 = vmatpush1.msra.mxu0 0.0
      %1028 = vmatprep.subr.mxu0 0.0
      %1029 = vmatpush1.msra.mxu0 0.0
      %1030 = vmatprep.subr.mxu0 0.0
      %1031 = vmatpush1.msra.mxu0 0.0
      %1032 = vmatprep.subr.mxu0 0.0
      %1033 = vmatpush1.msra.mxu0 0.0
      %1034 = vmatprep.subr.mxu0 0.0
      %1035 = vmatpush1.msra.mxu0 0.0
      %1036 = vmatprep.subr.mxu0 0.0
      %1037 = vmatpush1.msra.mxu0 0.0
      %1038 = vmatprep.subr.mxu0 0.0
      %1039 = vmatpush1.msra.mxu0 0.0
      %1040 = vmatprep.subr.mxu0 0.0
      %1041 = vmatpush1.msra.mxu0 0.0
      %1042 = vmatprep.subr.mxu0 0.0
      %1043 = vmatpush1.msra.mxu0 0.0
      %1044 = vmatprep.subr.mxu0 0.0
      %1045 = vmatpush1.msra.mxu0 0.0
      %1046 = vmatprep.mubr.f32.mxu0 0.0
      %1047 = vmatmul.mubr.f32.gmra.mrb[0].mxu0 %v497
      %v1048 = vpop.f32.mrb[0].mxu0
      %v1049 = vadd.f32 1e-05, %v1048
      %v1050 = vpop.f32.mrb[0].mxu0
      %1051 = vmatprep.mubr.f32.mxu0 0.0
      %1052 = vmatmul.mubr.f32.gmra.mrb[0].mxu0 %v500
      %v1053 = vpop.f32.mrb[0].mxu0
      %v1054 = vadd.f32 1e-05, %v1053
      %v1055 = vpop.f32.mrb[0].mxu0
      %1056 = vdwg.mxu0
      %v1057 = vrsqrt.pop %v1049
      %v1058 = vrsqrt.pop %v1054
      %1059 = vrot.lane.b32.xlu0 %v257, 124
      %v1060 = vpop.permute.xlu0 %1059
      %1061 = vrot.lane.b32.xlu0 %v258, 124
      %v1062 = vpop.permute.xlu0 %1061
      %v1065 = vmul.f32 %v1057, %v1060
      %v1066 = vmul.f32 %v1058, %v1062
      %1068 = vset.pattern.permute.xlu0 0
      %1069 = vperm.xlu0 %1068, %v1065
      %v1070 = vpop.permute.xlu0 %1069
      %1073 = vset.pattern.permute.xlu0 0
      %1074 = vperm.xlu0 %1073, %v1066
      %v1075 = vpop.permute.xlu0 %1074
      %v1077 = vmul.f32 %v968, %v1070
      %v1078 = vmul.f32 %v969, %v1070
      %v1079 = vmul.f32 %v970, %v1075
      %v1080 = vmul.f32 %v971, %v1075
      %1081 = vset.pattern.permute.xlu0 5
      %1082 = vperm.xlu0 %1081, %v257
      %v1083 = vpop.permute.xlu0 %1082
      %1085 = vset.pattern.permute.xlu0 5
      %1086 = vperm.xlu0 %1085, %v258
      %v1087 = vpop.permute.xlu0 %1086
      %v1089 = vadd.f32 %v1077, %v1083
      %v1090 = vadd.f32 %v1078, %v1083
      %v1091 = vadd.f32 %v1079, %v1087
      %v1092 = vadd.f32 %v1080, %v1087
      %v1093 = vmax.f32 %v1089, 0.0
      %v1094 = vmax.f32 %v1090, 0.0
      %v1095 = vmax.f32 %v1091, 0.0
      %v1096 = vmax.f32 %v1092, 0.0
      %v1097 = vadd.f32 %v265, %v1093
      %v1098 = vadd.f32 %v266, %v1094
      %v1099 = vadd.f32 %v267, %v1095
      %v1100 = vadd.f32 %v268, %v1096
      %v1101 = vmax.f32 %v1097, 0.0
      %v1102 = vmax.f32 %v1098, 0.0
      %v1103 = vmax.f32 %v1099, 0.0
      %v1104 = vmax.f32 %v1100, 0.0
      %1105 = vst [vmem:[%s251] sm:$0xff] %v1101
      %1106 = vst [vmem:[%s251 + $0x8] sm:$0xff] %v1102
      %1107 = vst [vmem:[%s251 + $0x10] sm:$0xff] %v1103
      %1108 = vst [vmem:[%s251 + $0x18] sm:$0xff] %v1104
      %p1109 = scmp.lt.s32.totalorder %s17, 1
      %s1110 = scalar_select %p1109, %s17, 1
      %s1111 = smul.addr %s1110, 4
      %s1112 = smul.addr %s1111, 8
      %s1113 = scalar_lea.vmem %s6, %s1112
      // Predicated region
      $region45: #{residual_block_forward.1} parent=43 // pred_check
        %p1114 = pneg %p166
      $region46: #{residual_block_forward.1} parent=43 // pred_check_branch
        %1116 = sbr.rel (%p1114) target = $region48
      $region47: #{residual_block_forward.1} parent=43 // pred_region
        _
      $region48: #{residual_block_forward.1} parent=43 // pred_fallthru
        _
    $region44: #{residual_block_forward.1} parent=5 // pred_fallthru
      _
    %p1117 = scmp.le.s32.totalorder 2, %s12
    // Predicated region
    $region49: #{residual_block_forward.1} parent=5 // pred_check
      %p1118 = pneg %p1117
    $region50: #{residual_block_forward.1} parent=5 // pred_check_branch
      %1120 = sbr.rel (%p1118) target = $region52
    $region51: #{residual_block_forward.1} parent=5 // pred_region
      %s1121 = ssub.s32 %s12, 2
      // Predicated region
      $region53: #{residual_block_forward.1} parent=51 // pred_check
        %p1122 = pneg %p172
      $region54: #{residual_block_forward.1} parent=51 // pred_check_branch
        %1124 = sbr.rel (%p1122) target = $region56
      $region55: #{residual_block_forward.1} parent=51 // pred_region
        %p1125 = scmp.lt.s32.totalorder %s18, 1
        %s1126 = scalar_select %p1125, %s18, 1
        %s1127 = smul.addr %s1126, 4
        %s1128 = smul.addr %s1127, 8
        %s1129 = scalar_lea.vmem %s6, %s1128
      $region56: #{residual_block_forward.1} parent=51 // pred_fallthru
        _
    $region52: #{residual_block_forward.1} parent=5 // pred_fallthru
      _
  $region6: #{residual_block_forward.1} parent=0 // loop_footer
    %s16 = sadd.s32 1, %s12
  $region7: #{residual_block_forward.1} parent=0 // loop_footer_branch
    %11 = sbr.rel target = $region3
  $region8: #{residual_block_forward.1} parent=0 // loop_exit
    _

</llo_original>
